<compile_context>
chip_gen: v6e
topology: v6e:2x2x1
jax: 0.10.0
libtpu: 0.0.40
codegen_flags: <defaults>
</compile_context>

<pallas_src>
import jax
import jax.numpy as jnp
from jax.experimental import pallas as pl
from jax.experimental.pallas import tpu as pltpu

NUM_CHANNELS = 5
_LOG_CLAMP = -100.0  # torch F.binary_cross_entropy clamps log terms at -100


def _bce_kernel(x_ref, t_ref, o_ref, acc_ref):
    # x_ref : (tile_n, tile_hw) probabilities for channel pl.program_id(2)
    # t_ref : (tile_n, tile_hw) targets (block index constant across the channel axis)
    # o_ref : (1, 8, 128)       per-row-tile partial sum (written once, at the last step)
    # acc_ref:(tile_n, tile_hw) f32 elementwise accumulator (VMEM scratch)
    j = pl.program_id(1)
    c = pl.program_id(2)
    last_j = pl.num_programs(1) - 1
    last_c = pl.num_programs(2) - 1

    @pl.when((j == 0) & (c == 0))
    def _init():
        acc_ref[...] = jnp.zeros_like(acc_ref)

    p = x_ref[...].astype(jnp.float32)
    t = t_ref[...].astype(jnp.float32)
    log_p = jnp.maximum(jnp.log(p), jnp.float32(_LOG_CLAMP))
    log_1mp = jnp.maximum(jnp.log(1.0 - p), jnp.float32(_LOG_CLAMP))
    # -(t*log(p) + (1-t)*log(1-p)) == t*(log(1-p) - log(p)) - log(1-p)
    # TODO(synk): if targets are known hard {0,1} labels, a single-log fast path
    # (clamp(log(where(t > 0.5, p, 1 - p)))) would halve the EUP transcendental load.
    acc_ref[...] += t * (log_1mp - log_p) - log_1mp

    @pl.when((j == last_j) & (c == last_c))
    def _finalize():
        total = jnp.sum(acc_ref[...])  # one reduction per row-tile
        o_ref[...] = jnp.full(o_ref.shape, total, dtype=o_ref.dtype)


def _round_up(x, m):
    return (x + m - 1) // m * m


def cross_entropy_loss(inputs, target):
    """inputs: (N, 5, H, W) probabilities, target: (N, H, W). Returns scalar f32 loss."""
    if isinstance(target, tuple):
        target = target[0]
    n, c, h, w = inputs.shape
    assert c == NUM_CHANNELS
    assert target.shape == (n, h, w)
    hw = h * w
    denom = jnp.float32(n * hw)

    x = inputs.reshape(n, NUM_CHANNELS, hw)  # free (contiguous) reshape, no dtype upcast
    t = target.reshape(n, hw)

    # ---- row (batch) tiling: full batch if small, otherwise 8-row tiles ----
    if n <= 8:
        tile_n, n_rows = n, n
    else:
        tile_n, n_rows = 8, _round_up(n, 8)
    n_i = n_rows // tile_n

    # ---- spatial tiling ----
    hw_blocks_min = -(-hw // 128)  # lane-tiles needed to cover hw
    # Largest f32 tile we allow is ~2 MiB -> max lane-tiles per spatial tile:
    max_blocks = max(1, (2 << 20) // (tile_n * 128 * 4))
    g = 1
    for d in range(1, hw_blocks_min + 1):
        if d > max_blocks:
            break
        if hw_blocks_min % d == 0:
            g = d
    hw_blocks = hw_blocks_min
    # Near-prime lane-tile counts would force tiny (128-wide) tiles; pad the spatial axis with
    # loss-neutral values (p = t = 1 -> bce = 0) up to a multiple of a healthy tile instead.
    if g < min(hw_blocks_min, max_blocks, 8):
        g = min(hw_blocks_min, max_blocks, 64)
        hw_blocks = _round_up(hw_blocks_min, g)
    hw_pad = hw_blocks * 128
    tile_hw = 128 * g
    n_j = hw_blocks // g

    # ---- loss-neutral padding (p = 1, t = 1 -> bce = 0 exactly) ----
    if hw_pad != hw:
        x = jnp.pad(x, ((0, 0), (0, 0), (0, hw_pad - hw)), constant_values=1.0)
        t = jnp.pad(t, ((0, 0), (0, hw_pad - hw)), constant_values=1.0)
    if n_rows != n:
        x = jnp.pad(x, ((0, n_rows - n), (0, 0), (0, 0)), constant_values=1.0)
        t = jnp.pad(t, ((0, n_rows - n), (0, 0)), constant_values=1.0)

    # Channel-major flat view: block column index of (channel c, spatial tile j) is c*n_j + j.
    x = x.reshape(n_rows, NUM_CHANNELS * hw_pad)  # contiguous merge -> free reshape

    x_bytes = tile_n * tile_hw * x.dtype.itemsize
    t_bytes = tile_n * tile_hw * t.dtype.itemsize
    acc_bytes = tile_n * tile_hw * 4
    vmem_limit = min(
        max(2 * (x_bytes + t_bytes) + acc_bytes + (8 << 20), 16 << 20), 64 << 20
    )

    out = pl.pallas_call(
        _bce_kernel,
        out_shape=jax.ShapeDtypeStruct((n_i, 8, 128), jnp.float32),
        grid_spec=pltpu.PrefetchScalarGridSpec(
            num_scalar_prefetch=0,
            grid=(n_i, n_j, NUM_CHANNELS),
            in_specs=[
                pl.BlockSpec((tile_n, tile_hw), lambda i, j, c: (i, c * n_j + j)),
                pl.BlockSpec((tile_n, tile_hw), lambda i, j, c: (i, j)),
            ],
            out_specs=pl.BlockSpec((1, 8, 128), lambda i, j, c: (i, 0, 0)),
            scratch_shapes=[pltpu.VMEM((tile_n, tile_hw), jnp.float32)],
        ),
        compiler_params=pltpu.CompilerParams(
            dimension_semantics=("parallel", "arbitrary", "arbitrary"),
            vmem_limit_bytes=vmem_limit,
        ),
    )(x, t)

    return jnp.sum(out[:, 0, 0]) / denom


def _reference_loss(inputs, target):
    # Pure-JAX reference mirroring torch.nn.functional.binary_cross_entropy (mean per channel).
    t = target.astype(jnp.float32)
    total = jnp.float32(0.0)
    for ch in range(NUM_CHANNELS):
        p = inputs[:, ch, :, :].astype(jnp.float32)
        log_p = jnp.maximum(jnp.log(p), -100.0)
        log_1mp = jnp.maximum(jnp.log(1.0 - p), -100.0)
        total = total + jnp.mean(-(t * log_p + (1.0 - t) * log_1mp))
    return total


if __name__ == "__main__":
    key = jax.random.PRNGKey(0)
    k_in, k_tgt = jax.random.split(key)

    N, C, H, W = 2, NUM_CHANNELS, 16, 16
    # Probabilities in (0, 1) — what the SOD model produces after sigmoid.
    inputs = jax.nn.sigmoid(jax.random.normal(k_in, (N, C, H, W), dtype=jnp.float32))
    # Soft saliency target in [0, 1].
    target = jax.random.uniform(k_tgt, (N, H, W), dtype=jnp.float32)

    loss = cross_entropy_loss(inputs, target)
    loss = jax.block_until_ready(loss)

    ref = _reference_loss(inputs, target)
    assert jnp.allclose(loss, ref, rtol=1e-5, atol=1e-5), (loss, ref)

    print("KERNEL_OK")
</pallas_src>

<mosaic_0001>
module attributes {stable_mosaic.version = 11 : i64} {
  func.func @_bce_kernel(%arg0: i32, %arg1: i32, %arg2: i32, %arg3: memref<2x256xf32, #tpu.memory_space<vmem>>, %arg4: memref<2x256xf32, #tpu.memory_space<vmem>>, %arg5: memref<1x8x128xf32, #tpu.memory_space<vmem>>, %arg6: memref<2x256xf32, #tpu.memory_space<vmem>>) attributes {dimension_semantics = [#tpu.dimension_semantics<parallel>, #tpu.dimension_semantics<arbitrary>, #tpu.dimension_semantics<arbitrary>], iteration_bounds = array<i64: 1, 1, 5>, scalar_prefetch = 0 : i64, scratch_operands = 1 : i64, tpu.core_type = #tpu.core_type<tc>, window_params = [{transform_indices = @transform_0, window_bounds = array<i64: 2, 256>}, {transform_indices = @transform_1, window_bounds = array<i64: 2, 256>}, {transform_indices = @transform_2, window_bounds = array<i64: 1, 8, 128>}]} {
    %c0_i32 = arith.constant 0 : i32
    %0 = arith.cmpi eq, %arg1, %c0_i32 : i32
    %c0_i32_0 = arith.constant 0 : i32
    %1 = arith.cmpi eq, %arg2, %c0_i32_0 : i32
    %2 = arith.andi %0, %1 : i1
    %3 = arith.extui %2 : i1 to i32
    %c0_i32_1 = arith.constant 0 : i32
    %4 = arith.cmpi ne, %3, %c0_i32_1 : i32
    scf.if %4 {
      %cst_13 = arith.constant 0.000000e+00 : f32
      %26 = vector.broadcast %cst_13 : f32 to vector<2x256xf32>
      %c0_14 = arith.constant 0 : index
      %c0_15 = arith.constant 0 : index
      %27 = vector.load %arg6[%c0_14, %c0_15] : memref<2x256xf32, #tpu.memory_space<vmem>>, vector<2x256xf32>
      tpu.vector_store %arg6[%c0_14, %c0_15], %26 {strides = array<i32>} : memref<2x256xf32, #tpu.memory_space<vmem>>, vector<2x256xf32>,
    } else {
    }
    %c0 = arith.constant 0 : index
    %c0_2 = arith.constant 0 : index
    %5 = vector.load %arg3[%c0, %c0_2] : memref<2x256xf32, #tpu.memory_space<vmem>>, vector<2x256xf32>
    %c0_3 = arith.constant 0 : index
    %c0_4 = arith.constant 0 : index
    %6 = vector.load %arg4[%c0_3, %c0_4] : memref<2x256xf32, #tpu.memory_space<vmem>>, vector<2x256xf32>
    %7 = math.log %5 : vector<2x256xf32>
    %cst = arith.constant -1.000000e+02 : f32
    %8 = vector.broadcast %cst : f32 to vector<2x256xf32>
    %9 = arith.maximumf %7, %8 : vector<2x256xf32>
    %cst_5 = arith.constant 1.000000e+00 : f32
    %10 = vector.broadcast %cst_5 : f32 to vector<2x256xf32>
    %11 = arith.subf %10, %5 : vector<2x256xf32>
    %12 = math.log %11 : vector<2x256xf32>
    %cst_6 = arith.constant -1.000000e+02 : f32
    %13 = vector.broadcast %cst_6 : f32 to vector<2x256xf32>
    %14 = arith.maximumf %12, %13 : vector<2x256xf32>
    %c0_7 = arith.constant 0 : index
    %c0_8 = arith.constant 0 : index
    %15 = vector.load %arg6[%c0_7, %c0_8] : memref<2x256xf32, #tpu.memory_space<vmem>>, vector<2x256xf32>
    %16 = arith.subf %14, %9 : vector<2x256xf32>
    %17 = arith.mulf %6, %16 : vector<2x256xf32>
    %18 = arith.subf %17, %14 : vector<2x256xf32>
    %19 = arith.addf %15, %18 : vector<2x256xf32>
    %c0_9 = arith.constant 0 : index
    %c0_10 = arith.constant 0 : index
    %20 = vector.load %arg6[%c0_9, %c0_10] : memref<2x256xf32, #tpu.memory_space<vmem>>, vector<2x256xf32>
    tpu.vector_store %arg6[%c0_9, %c0_10], %19 {strides = array<i32>} : memref<2x256xf32, #tpu.memory_space<vmem>>, vector<2x256xf32>,
    %c0_i32_11 = arith.constant 0 : i32
    %21 = arith.cmpi eq, %arg1, %c0_i32_11 : i32
    %c4_i32 = arith.constant 4 : i32
    %22 = arith.cmpi eq, %arg2, %c4_i32 : i32
    %23 = arith.andi %21, %22 : i1
    %24 = arith.extui %23 : i1 to i32
    %c0_i32_12 = arith.constant 0 : i32
    %25 = arith.cmpi ne, %24, %c0_i32_12 : i32
    scf.if %25 {
      %c0_13 = arith.constant 0 : index
      %c0_14 = arith.constant 0 : index
      %26 = vector.load %arg6[%c0_13, %c0_14] : memref<2x256xf32, #tpu.memory_space<vmem>>, vector<2x256xf32>
      %27 = vector.shape_cast %26 : vector<2x256xf32> to vector<1x2x256xf32>
      %cst_15 = arith.constant dense<0.000000e+00> : vector<1xf32>
      %28 = vector.multi_reduction <add>, %27, %cst_15 [1, 2] : vector<1x2x256xf32> to vector<1xf32>
      %29 = vector.shape_cast %28 : vector<1xf32> to vector<1x1x1xf32>
      %30 = vector.extract %29[0, 0, 0] : f32 from vector<1x1x1xf32>
      %31 = vector.broadcast %30 : f32 to vector<1x8x128xf32>
      %c0_16 = arith.constant 0 : index
      %c0_17 = arith.constant 0 : index
      %c0_18 = arith.constant 0 : index
      %32 = vector.load %arg5[%c0_16, %c0_17, %c0_18] : memref<1x8x128xf32, #tpu.memory_space<vmem>>, vector<1x8x128xf32>
      tpu.vector_store %arg5[%c0_16, %c0_17, %c0_18], %31 {strides = array<i32>} : memref<1x8x128xf32, #tpu.memory_space<vmem>>, vector<1x8x128xf32>,
    } else {
    }
    return
  }
  func.func @transform_0(%arg0: i32, %arg1: i32, %arg2: i32) -> (i32, i32) {
    %c1_i32 = arith.constant 1 : i32
    %0 = arith.muli %arg2, %c1_i32 : i32
    %1 = arith.addi %0, %arg1 : i32
    %c0_i32 = arith.constant 0 : i32
    return %arg0, %1 : i32, i32
  }
  func.func @transform_1(%arg0: i32, %arg1: i32, %arg2: i32) -> (i32, i32) {
    %c0_i32 = arith.constant 0 : i32
    return %arg0, %arg1 : i32, i32
  }
  func.func @transform_2(%arg0: i32, %arg1: i32, %arg2: i32) -> (i32, i32, i32) {
    %c0_i32 = arith.constant 0 : i32
    %c0_i32_0 = arith.constant 0 : i32
    %c0_i32_1 = arith.constant 0 : i32
    return %arg0, %c0_i32, %c0_i32_0 : i32, i32, i32
  }
}

</mosaic_0001>

<llo_original>
// kernel: tpu_custom_call.1
$region0: #{tpu_custom_call.1}
  #allocation0 [shape = 'u32[]', space=smem, size = 0x4, offset = 0x4, fixed_abs, tag = 'smem constant byte address 0x4 - core index']
  #allocation1 [shape = 'u32[144,128]{1,0:T(1,128)}', space=vmem, size = 0x12000, scoped, tag = 'internal scratch']
  #allocation2 [shape = 'f32[2,256]{1,0:T(2,128)}', space=vmem, size = 0x800, scoped, tag = 'scratch operand']
  %s0 = inlined_call_operand.hbm [shape: f32[2,1280], index: 0, kind: input, shape index: {}]
  %s1 = inlined_call_operand.hbm [shape: f32[2,256], index: 1, kind: input, shape index: {}]
  %s2 = inlined_call_operand.hbm [shape: f32[1,8,128], index: 2, kind: output, shape index: {}]
  %s3 = sld [smem:[#allocation0]]
  $region57: #{tpu_custom_call.1} parent=0
    _
  %s5 = ssub.s32 1, %s3
  %s6 = scalar_select 0, %s5, %s3
  $region1: #{tpu_custom_call.1} parent=0
    #allocation3 [shape = 'u8[4096]{0}', space=vmem, size = 0x1000, scoped, tag = 'input window, operand 0']
    #allocation4 [shape = 's32[2]{0}', space=sflag, size = 0x8, scoped, tag = 'scoped memory for tpu_custom_call.1']
    #allocation5 [shape = 's32[2]{0}', space=sflag, size = 0x8, scoped, tag = 'scoped memory for tpu_custom_call.1']
    #allocation6 [shape = 'u8[2048]{0}', space=vmem, size = 0x800, scoped, tag = 'input window, operand 1, single buffered']
    #allocation7 [shape = 's32[1]{0}', space=sflag, size = 0x4, scoped, tag = 'scoped memory for tpu_custom_call.1']
    #allocation8 [shape = 'u8[4096]{0}', space=vmem, size = 0x1000, scoped, tag = 'output window, operand 0, single buffered']
    %7 = vsyncpa [#allocation4], 0
    %s8 = scalar_lea.sflag [#allocation4], 1
    %9 = vsyncpa %s8, 0
    %10 = vsyncpa [#allocation7], 0
    %11 = vsyncpa [#allocation5], 0
    loop: start=0, step=1, limit=7
    $region2: #{tpu_custom_call.1} parent=1 // loop_pre_header
      _
    $region3: #{tpu_custom_call.1} parent=1 // loop_header
      %s13 = sphi 0, %s17
      %p14 = scmp.ge.s32.totalorder %s13, 7
      %s20 = sphi 0, %s39
      %s21 = sphi 0, %s35
      %s22 = sphi 0, %s31
      %s23 = sphi 0, %s20
      %s24 = sphi 0, %s21
      %s25 = sphi 0, %s22
      %s26 = sphi 0, %s23
      %s27 = sphi 0, %s24
      %s28 = sphi 0, %s25
      %s46 = sphi 0, %s48
      %s49 = sphi 0, %s46
      %s50 = sphi 0, %s49
      %s66 = sphi 0, %s50
      %s74 = sphi 0, %s76
      %s77 = sphi 0, %s74
      %s78 = sphi 0, %s77
      %s94 = sphi 0, %s78
      %s100 = sphi 0, %s102
      %s103 = sphi 0, %s100
      %s104 = sphi 0, %s103
      %s120 = sphi 0, %s104
    $region4: #{tpu_custom_call.1} parent=1 // loop_header_branch
      %16 = sbr.rel (%p14) target = $region8
    $region5: #{tpu_custom_call.1} parent=1 // loop_body
      %s18 = ssub.s32 %s13, 1
      %s19 = ssub.s32 %s13, 2
      %s29 = sadd.s32 1, %s22
      %p30 = scmp.ge.s32.totalorder %s29, 5
      %s31 = scalar_select %p30, 0, %s29
      %s32 = sadd.s32 1, %s21
      %s33 = scalar_select %p30, %s32, %s21
      %p34 = scmp.ge.s32.totalorder %s33, 1
      %s35 = scalar_select %p34, 0, %s33
      %s36 = sadd.s32 1, %s20
      %s37 = scalar_select %p34, %s36, %s20
      %p38 = scmp.ge.s32.totalorder %s37, 1
      %s39 = scalar_select %p38, 0, %s37
      %s40 = sadd.s32 %s22, %s21
      %s41 = sadd.s32 %s31, %s35
      %s42 = ssub.s32 %s20, %s39
      %s43 = ssub.s32 %s40, %s41
      %s44 = sor.u32 %s42, %s43
      %p45 = scmp.eq.s32.totalorder %s44, 0
      %s47 = sadd.s32 %s46, 1
      %s48 = scalar_select %p45, %s46, %s47
      %p51 = pneg %p45
      %p52 = scmp.eq.s32.totalorder %s13, 4
      %p53 = por %p51, %p52
      %p54 = scmp.ne.s32.totalorder %s46, %s49
      %p55 = scmp.eq.s32.totalorder %s13, 0
      %p56 = por %p54, %p55
      %p57 = scmp.ne.s32.totalorder %s46, %s49
      %p58 = scmp.eq.s32.totalorder %s18, 4
      %p59 = por %p57, %p58
      %p60 = scmp.ne.s32.totalorder %s49, %s50
      %p61 = scmp.eq.s32.totalorder %s18, 0
      %p62 = por %p60, %p61
      %p63 = scmp.ne.s32.totalorder %s49, %s50
      %p64 = scmp.eq.s32.totalorder %s19, 4
      %p65 = por %p63, %p64
      %p67 = scmp.ne.s32.totalorder %s50, %s66
      %p68 = scmp.eq.s32.totalorder %s19, 0
      %p69 = por %p67, %p68
      %s70 = ssub.s32 %s20, %s39
      %s71 = ssub.s32 %s21, %s35
      %s72 = sor.u32 %s70, %s71
      %p73 = scmp.eq.s32.totalorder %s72, 0
      %s75 = sadd.s32 %s74, 1
      %s76 = scalar_select %p73, %s74, %s75
      %p79 = pneg %p73
      %p80 = scmp.eq.s32.totalorder %s13, 4
      %p81 = por %p79, %p80
      %p82 = scmp.ne.s32.totalorder %s74, %s77
      %p83 = scmp.eq.s32.totalorder %s13, 0
      %p84 = por %p82, %p83
      %p85 = scmp.ne.s32.totalorder %s74, %s77
      %p86 = scmp.eq.s32.totalorder %s18, 4
      %p87 = por %p85, %p86
      %p88 = scmp.ne.s32.totalorder %s77, %s78
      %p89 = scmp.eq.s32.totalorder %s18, 0
      %p90 = por %p88, %p89
      %p91 = scmp.ne.s32.totalorder %s77, %s78
      %p92 = scmp.eq.s32.totalorder %s19, 4
      %p93 = por %p91, %p92
      %p95 = scmp.ne.s32.totalorder %s78, %s94
      %p96 = scmp.eq.s32.totalorder %s19, 0
      %p97 = por %p95, %p96
      %s98 = ssub.s32 %s20, %s39
      %p99 = scmp.eq.s32.totalorder %s98, 0
      %s101 = sadd.s32 %s100, 1
      %s102 = scalar_select %p99, %s100, %s101
      %p105 = pneg %p99
      %p106 = scmp.eq.s32.totalorder %s13, 4
      %p107 = por %p105, %p106
      %p108 = scmp.ne.s32.totalorder %s100, %s103
      %p109 = scmp.eq.s32.totalorder %s13, 0
      %p110 = por %p108, %p109
      %p111 = scmp.ne.s32.totalorder %s100, %s103
      %p112 = scmp.eq.s32.totalorder %s18, 4
      %p113 = por %p111, %p112
      %p114 = scmp.ne.s32.totalorder %s103, %s104
      %p115 = scmp.eq.s32.totalorder %s18, 0
      %p116 = por %p114, %p115
      %p117 = scmp.ne.s32.totalorder %s103, %s104
      %p118 = scmp.eq.s32.totalorder %s19, 4
      %p119 = por %p117, %p118
      %p121 = scmp.ne.s32.totalorder %s104, %s120
      %p122 = scmp.eq.s32.totalorder %s19, 0
      %p123 = por %p121, %p122
      %p124 = scmp.le.s32.totalorder 1, %s13
      %p125 = scmp.lt.s32.totalorder %s13, 6
      %p126 = pnand %p124, %p125
      %p127 = pneg %p126
      // Predicated region
      $region9: #{tpu_custom_call.1} parent=5 // pred_check
        _
      $region10: #{tpu_custom_call.1} parent=5 // pred_check_branch
        %129 = sbr.rel (%p126) target = $region12
      $region11: #{tpu_custom_call.1} parent=5 // pred_region
        %s130 = ssub.s32 %s13, 1
        // Predicated region
        $region13: #{tpu_custom_call.1} parent=11 // pred_check
          %p131 = pneg %p90
        $region14: #{tpu_custom_call.1} parent=11 // pred_check_branch
          %133 = sbr.rel (%p131) target = $region16
        $region15: #{tpu_custom_call.1} parent=11 // pred_region
          %s134 = smul.u32 2, %s24
          %s136 = ssub.s32 64, 64
          %137 = vsyncadd [#allocation7], %s136
          %s138 = smul.addr %s23, 2
          %s139 = sadd.s32 %s134, %s138
          %s140 = smul.addr %s139, 32
          %s141 = scalar_lea.hbm %s1, %s140
          %s143 = sshll.u32 [#allocation6], 4
          %s144 = int_to_ptr.vmem [resolvable:$true] %s143
          %146 = dma.hbm_to_vmem [thread:$0]  %s141, 64, %s144, [#allocation7]
        $region16: #{tpu_custom_call.1} parent=11 // pred_fallthru
          _
      $region12: #{tpu_custom_call.1} parent=5 // pred_fallthru
        _
      %p147 = scmp.lt.s32.totalorder %s13, 5
      // Predicated region
      $region17: #{tpu_custom_call.1} parent=5 // pred_check
        %p148 = pneg %p147
      $region18: #{tpu_custom_call.1} parent=5 // pred_check_branch
        %150 = sbr.rel (%p148) target = $region20
      $region19: #{tpu_custom_call.1} parent=5 // pred_region
        // Predicated region
        $region21: #{tpu_custom_call.1} parent=19 // pred_check
          %p151 = pneg %p56
        $region22: #{tpu_custom_call.1} parent=19 // pred_check_branch
          %153 = sbr.rel (%p151) target = $region24
        $region23: #{tpu_custom_call.1} parent=19 // pred_region
          %s154 = sand.u32 %s46, 1
          %s155 = scalar_lea.sflag [#allocation4], %s154
          %s156 = sand.u32 %s46, 1
          %s157 = smul.addr %s156, 4
          %s158 = scalar_lea.vmem [#allocation3], %s157
          %s159 = sadd.s32 %s22, %s21
          %s160 = smul.u32 2, %s159
          %s162 = ssub.s32 64, 64
          %163 = vsyncadd %s155, %s162
          %s164 = smul.addr %s20, 10
          %s165 = sadd.s32 %s160, %s164
          %s166 = smul.addr %s165, 32
          %s167 = scalar_lea.hbm %s0, %s166
          %s169 = sshll.u32 %s158, 4
          %s170 = int_to_ptr.vmem [resolvable:$true] %s169
          %172 = dma.hbm_to_vmem [thread:$0]  %s167, 64, %s170, %s155
        $region24: #{tpu_custom_call.1} parent=19 // pred_fallthru
          _
      $region20: #{tpu_custom_call.1} parent=5 // pred_fallthru
        _
      %p173 = scmp.le.s32.totalorder 1, %s13
      %p174 = scmp.lt.s32.totalorder %s13, 6
      %p175 = pnand %p173, %p174
      %p176 = pneg %p175
      // Predicated region
      $region25: #{tpu_custom_call.1} parent=5 // pred_check
        _
      $region26: #{tpu_custom_call.1} parent=5 // pred_check_branch
        %178 = sbr.rel (%p175) target = $region28
      $region27: #{tpu_custom_call.1} parent=5 // pred_region
        %s179 = ssub.s32 %s13, 1
        %s180 = sand.u32 %s49, 1
        %s181 = scalar_lea.sflag [#allocation4], %s180
        %s182 = sand.u32 %s49, 1
        %s183 = smul.addr %s182, 4
        %s184 = scalar_lea.vmem [#allocation3], %s183
        // Predicated region
        $region29: #{tpu_custom_call.1} parent=27 // pred_check
          %p185 = pneg %p62
        $region30: #{tpu_custom_call.1} parent=27 // pred_check_branch
          %187 = sbr.rel (%p185) target = $region32
        $region31: #{tpu_custom_call.1} parent=27 // pred_region
          %188 = dma.done %s181, 64
        $region32: #{tpu_custom_call.1} parent=27 // pred_fallthru
          _
        // Predicated region
        $region33: #{tpu_custom_call.1} parent=27 // pred_check
          %p189 = pneg %p90
        $region34: #{tpu_custom_call.1} parent=27 // pred_check_branch
          %191 = sbr.rel (%p189) target = $region36
        $region35: #{tpu_custom_call.1} parent=27 // pred_region
          %192 = dma.done [#allocation7], 64
        $region36: #{tpu_custom_call.1} parent=27 // pred_fallthru
          _
        %s193 = sand.u32 %s49, 1
        %s194 = scalar_lea.sflag [#allocation4], %s193
        %s195 = sand.u32 %s49, 1
        %s196 = smul.addr %s195, 4
        %s197 = scalar_lea.vmem [#allocation3], %s196
        %p198 = pneg %p62
        %p199 = pneg %p59
        %p200 = pneg %p90
        %p201 = pneg %p87
        %p202 = pneg %p116
        %p203 = pneg %p113
        %s204 = sadd.s32 %s25, %s24
        %s205 = smul.u32 2, %s204
        %s206 = smul.u32 2, %s24
        %p207 = scmp.eq.s32.totalorder %s24, 0
        %p208 = scmp.eq.s32.totalorder %s25, 0
        %p209 = pnand %p207, %p208
        %p210 = pneg %p209
        // Predicated region
        $region37: #{tpu_custom_call.1} parent=27 // pred_check
          _
        $region38: #{tpu_custom_call.1} parent=27 // pred_check_branch
          %212 = sbr.rel (%p209) target = $region40
        $region39: #{tpu_custom_call.1} parent=27 // pred_region
          %213 = vst [vmem:[#allocation2] sm:$0xf] 0.0
        $region40: #{tpu_custom_call.1} parent=27 // pred_fallthru
          _
        %v214 = vld [vmem:[%s184] sm:$0xf]
        %v215 = vld [vmem:[#allocation6] sm:$0xf]
        %v216 = vlog2.pop %v214
        %v217 = vmul.f32 %v216, 0.6931472
        %v218 = vmax.f32 %v217, -100.0
        %v219 = vsub.f32 1.0, %v214
        %v220 = vlog2.pop %v219
        %v221 = vmul.f32 %v220, 0.6931472
        %v222 = vmax.f32 %v221, -100.0
        %v223 = vld [vmem:[#allocation2] sm:$0xf]
        %v224 = vsub.f32 %v222, %v218
        %v225 = vmul.f32 %v215, %v224
        %v226 = vsub.f32 %v225, %v222
        %v227 = vadd.f32 %v223, %v226
        %228 = vst [vmem:[#allocation2] sm:$0xf] %v227
        %p229 = scmp.eq.s32.totalorder %s25, 4
        %p230 = pnand %p207, %p229
        %p231 = pneg %p230
        // Predicated region
        $region41: #{tpu_custom_call.1} parent=27 // pred_check
          _
        $region42: #{tpu_custom_call.1} parent=27 // pred_check_branch
          %233 = sbr.rel (%p230) target = $region44
        $region43: #{tpu_custom_call.1} parent=27 // pred_region
          %v234 = vld [vmem:[#allocation2] sm:$0xf]
          %v237 = vunpack.c.l.s4 1983009808
          %v238 = vunpack.c.0.s8 %v237
          %v239 = vlaneseq
          %v240 = vshrl.u32 %v239, 7
          %v241 = vsub.s32 %v238, %v240
          %v242 = vrot.slane %v234, %v241
          %v243 = vcombine.high %v242, %v242
          %vm246 = vcmask 1041408
          %v247 = vsel %vm246, %v242, 0.0
          %v248 = vsel %vm246, %v243, 0.0
          %v249 = vadd.f32 %v247, %v248
          %250 = vadd.xlane.f32.xlu0 %v249
          %v251 = vpop.xlane.xlu0 %250
          %v252 = vrot.slane %v251, 4
          %v253 = vadd.f32 %v251, %v252
          %v254 = vrot.slane %v253, 2
          %v255 = vadd.f32 %v253, %v254
          %v256 = vrot.slane %v255, 1
          %v257 = vadd.f32 %v255, %v256
          %s258 = vtos %v257
          %v259 = vstv %s258
          %260 = vst [vmem:[#allocation8] sm:$0xff] %v259
        $region44: #{tpu_custom_call.1} parent=27 // pred_fallthru
          _
        // Predicated region
        $region45: #{tpu_custom_call.1} parent=27 // pred_check
          %p261 = pneg %p113
        $region46: #{tpu_custom_call.1} parent=27 // pred_check_branch
          %263 = sbr.rel (%p261) target = $region48
        $region47: #{tpu_custom_call.1} parent=27 // pred_region
          %s265 = ssub.s32 128, 128
          %266 = vsyncadd [#allocation5], %s265
          %s267 = smul.addr %s23, 128
          %s268 = scalar_lea.hbm %s2, %s267
          %s270 = sshll.u32 [#allocation8], 4
          %s271 = int_to_ptr.vmem [resolvable:$true] %s270
          %273 = dma.vmem_to_hbm [thread:$0]  %s271, 128, %s268, [#allocation5]
        $region48: #{tpu_custom_call.1} parent=27 // pred_fallthru
          _
        // Predicated region
        $region49: #{tpu_custom_call.1} parent=27 // pred_check
          %p274 = pneg %p113
        $region50: #{tpu_custom_call.1} parent=27 // pred_check_branch
          %276 = sbr.rel (%p274) target = $region52
        $region51: #{tpu_custom_call.1} parent=27 // pred_region
          %277 = dma.done [#allocation5], 128
        $region52: #{tpu_custom_call.1} parent=27 // pred_fallthru
          _
      $region28: #{tpu_custom_call.1} parent=5 // pred_fallthru
        _
      %p278 = scmp.le.s32.totalorder 2, %s13
      // Predicated region
      $region53: #{tpu_custom_call.1} parent=5 // pred_check
        %p279 = pneg %p278
      $region54: #{tpu_custom_call.1} parent=5 // pred_check_branch
        %281 = sbr.rel (%p279) target = $region56
      $region55: #{tpu_custom_call.1} parent=5 // pred_region
        %s282 = ssub.s32 %s13, 2
      $region56: #{tpu_custom_call.1} parent=5 // pred_fallthru
        _
    $region6: #{tpu_custom_call.1} parent=1 // loop_footer
      %s17 = sadd.s32 1, %s13
    $region7: #{tpu_custom_call.1} parent=1 // loop_footer_branch
      %12 = sbr.rel target = $region3
    $region8: #{tpu_custom_call.1} parent=1 // loop_exit
      _
    %283 = vsyncpa [#allocation4], 1
    %s284 = scalar_lea.sflag [#allocation4], 1
    %285 = vsyncpa %s284, 1
    %286 = vsyncpa [#allocation7], 1
    %287 = vsyncpa [#allocation5], 1
    %s288 = scalar_lea.sflag [#allocation5], 1
    %289 = vsyncpa %s288, 1

</llo_original>
